<compile_context>
chip_gen: v6e
topology: v6e:2x2x1
jax: 0.10.0
libtpu: 0.0.40
codegen_flags: <defaults>
</compile_context>

<pallas_src>
import jax
import jax.numpy as jnp
from jax import lax
from jax.experimental import pallas as pl
from jax.experimental.pallas import tpu as pltpu

B, T, H = 8, 16, 32          # batch, time steps, MLP hidden width
N = B * T                    # 128 samples per call -> full vreg lane occupancy
NUM_LIB_TERMS = 3            # cx0, cx1, cx2 (Duffing library)

# contract a [1, M] row with the SECOND axis of an [M, M] operator  ==  Op @ v
_PHI_DN = (((1,), (1,)), ((), ()))


def _fused_kernel(x_ref, p_ref, w2_ref, w3_ref, phid_ref, phii_ref, sel_ref,
                  sc_ref, out_ref):
    # TODO(synk): Network(cfg) is not defined in the source file; substituted a
    # deterministic 3-layer tanh MLP applied independently per time step.
    # TODO(synk): arbitrary eval()'d `function_acceleration` strings cannot be
    # compiled; a fixed 3-term Duffing library f - cx0*y - cx1*x - cx2*x^3 is used.
    x_row = x_ref[...]                        # [1, N] normalized excitation (b-major)
    p = p_ref[...]                            # [H, 3] packed per-feature params
    w1 = p[:, 0:1]                            # [H, 1]
    b1 = p[:, 1:2]
    b2 = p[:, 2:3]
    b3 = sc_ref[0]
    cx0, cx1, cx2 = sc_ref[1], sc_ref[2], sc_ref[3]
    exc_max, disp_max, vel_max = sc_ref[4], sc_ref[5], sc_ref[6]
    inv_vel_max = 1.0 / vel_max               # scalar path; free

    # ---- displacement MLP: hidden features in sublanes, B*T samples in lanes ----
    h1 = jnp.tanh(w1 * x_row + b1)                                      # [H, N]
    # NOTE(v6e/v7x): once H / N grow, cast w2 and h1 to bf16 here (keeping
    # preferred_element_type=f32) for a single-pass MXU op; at H=32 it is noise
    # and v5e would up-convert anyway, so operands stay f32.
    h2 = jnp.tanh(jnp.dot(w2_ref[...], h1,
                          preferred_element_type=jnp.float32) + b2)     # [H, N]
    disp = jnp.dot(w3_ref[...], h2,
                   preferred_element_type=jnp.float32) + b3             # [1, N]
    out_ref[0:1, :] = disp                    # lane-dense full-row store (row 0)

    # ---- physics residual, batched over B via block-diagonal operators ----
    # vel[b*T+i] = sum_j Phi_diff[i, j] * disp[b*T+j]   (one [1,N]x[N,N] MXU dot)
    vel = lax.dot_general(disp, phid_ref[...], _PHI_DN,
                          preferred_element_type=jnp.float32) * disp_max
    y = vel * inv_vel_max                                               # normalized velocity
    f_row = x_row * exc_max
    acc = f_row - cx0 * y - cx1 * disp - cx2 * disp * disp * disp       # acceleration fit
    # y0[b*T+t] = y[b*T]  (per-batch broadcast of normalized_velocity[:, 0:1, :])
    y0 = lax.dot_general(y, sel_ref[...], _PHI_DN,
                         preferred_element_type=jnp.float32)
    integ = lax.dot_general(acc, phii_ref[...], _PHI_DN,
                            preferred_element_type=jnp.float32) * inv_vel_max + y0
    out_ref[1:2, :] = integ - y               # single full-row store (row 1)


_VMEM = pl.BlockSpec(memory_space=pltpu.MemorySpace.VMEM)
_SMEM = pl.BlockSpec(memory_space=pltpu.MemorySpace.SMEM)

_COST = pl.CostEstimate(
    flops=2 * N * H * H + 2 * N * H + 3 * 2 * N * N + 10 * N,
    transcendentals=2 * N * H,
    bytes_accessed=4 * (N + 3 * H + H * H + H + 3 * N * N + 7 + 2 * N),
)


@jax.jit
def physics_network_forward(x_bt1, kparams):
    """x_bt1: [B, T, 1] normalized excitation.  Returns (normalized_displacement,
    normalized_velocity_error), each [B, T, 1] — matching PhysicsNetwork.forward."""
    x_row = x_bt1.reshape(1, N).astype(jnp.float32)     # b-major flatten (pure glue)
    out = pl.pallas_call(
        _fused_kernel,
        out_shape=jax.ShapeDtypeStruct((2, N), jnp.float32),
        in_specs=[_VMEM, _VMEM, _VMEM, _VMEM, _VMEM, _VMEM, _VMEM, _SMEM],
        out_specs=_VMEM,
        cost_estimate=_COST,
        # NOTE: no grid — at N=128 a grid step (~0.35us) costs more than the
        # whole kernel.  If N is scaled to thousands of samples per call, add a
        # grid over the lane (sample) axis with dimension_semantics=("parallel",)
        # so v7x's second TensorCore is used, and re-derive the tile budget for
        # v7x's 64 MiB VMEM (default scoped 32 MiB).
    )(x_row, kparams["p_slab"], kparams["w2"], kparams["w3_row"],
      kparams["phi_diff_big"], kparams["phi_int_big"], kparams["sel_first"],
      kparams["scalars"])
    disp = out[0].reshape(B, T, 1)
    err = out[1].reshape(B, T, 1)
    return disp, err


def pack_kernel_params(p):
    """One-time (outside jit) packing of module parameters / buffers for the kernel."""
    eye_b = jnp.eye(B, dtype=jnp.float32)
    idx = jnp.arange(N)
    # sel_first[i, j] = 1  iff  j == (i // T) * T   (first time step of i's batch)
    sel_first = ((idx[:, None] // T) * T == idx[None, :]).astype(jnp.float32)   # [N, N]
    return {
        "p_slab": jnp.stack([p["w1"], p["b1"], p["b2"]], axis=1).astype(jnp.float32),  # [H, 3]
        "w2": p["w2"].astype(jnp.float32),                                             # [H, H]
        "w3_row": p["w3"].reshape(1, H).astype(jnp.float32),                           # [1, H]
        "phi_diff_big": jnp.kron(eye_b, p["phi_diff"].astype(jnp.float32)),            # [N, N]
        "phi_int_big": jnp.kron(eye_b, p["phi_int"].astype(jnp.float32)),              # [N, N]
        "sel_first": sel_first,                                                        # [N, N]
        "scalars": jnp.concatenate(
            [p["b3"], p["cx"],
             jnp.array([p["exc_max"], p["disp_max"], p["vel_max"]], jnp.float32)]
        ).astype(jnp.float32),                                                         # (7,)
    }


def _reference_forward(x_bt1, p):
    """Pure-JAX reference mirroring PhysicsNetwork.step_forward semantics."""
    xf = x_bt1.reshape(B * T, 1)
    h1 = jnp.tanh(xf * p["w1"][None, :] + p["b1"][None, :])
    h2 = jnp.tanh(h1 @ p["w2"].T + p["b2"][None, :])
    disp_f = h2 @ p["w3"][:, None] + p["b3"]
    nd = disp_f.reshape(B, T, 1)                                 # normalized_displacement
    vel = jnp.einsum("ij,bjc->bic", p["phi_diff"], nd) * p["disp_max"]
    y = vel / p["vel_max"]                                       # normalized_velocity
    f = x_bt1 * p["exc_max"]
    cx = p["cx"]
    acc = f - cx[0] * y - cx[1] * nd - cx[2] * nd * nd * nd
    integ = (jnp.einsum("ij,bjc->bic", p["phi_int"], acc) / p["vel_max"]
             + y[:, 0:1, :])
    return nd, integ - y


if __name__ == "__main__":
    key = jax.random.PRNGKey(0)
    ks = jax.random.split(key, 6)

    params = {
        "w1": 0.5 * jax.random.normal(ks[0], (H,), jnp.float32),
        "b1": 0.1 * jax.random.normal(ks[1], (H,), jnp.float32),
        "w2": (1.0 / jnp.sqrt(H)) * jax.random.normal(ks[2], (H, H), jnp.float32),
        "b2": 0.1 * jax.random.normal(ks[3], (H,), jnp.float32),
        "w3": (1.0 / jnp.sqrt(H)) * jax.random.normal(ks[4], (H,), jnp.float32),
        "b3": 0.05 * jnp.ones((1,), jnp.float32),
        # cx_params: nn.Parameter(torch.tensor(1.0)) for each library term
        "cx": jnp.ones((NUM_LIB_TERMS,), jnp.float32),
        # max_values buffers: runtime values (passed via SMEM), not constants
        "exc_max": jnp.float32(2.0),
        "disp_max": jnp.float32(1.5),
        "vel_max": jnp.float32(3.0),
    }
    # Deterministic integration / differentiation operators (buffers of the module)
    dt = 0.05
    params["phi_int"] = dt * jnp.tril(jnp.ones((T, T), jnp.float32))
    params["phi_diff"] = (jnp.eye(T, dtype=jnp.float32)
                          - jnp.eye(T, k=-1, dtype=jnp.float32)) / dt

    kparams = pack_kernel_params(params)
    x = jax.random.normal(ks[5], (B, T, 1), jnp.float32)

    disp, err = physics_network_forward(x, kparams)
    jax.block_until_ready((disp, err))

    rd, re = _reference_forward(x, params)
    assert disp.shape == (B, T, 1) and err.shape == (B, T, 1)
    assert jnp.allclose(disp, rd, rtol=1e-3, atol=1e-3)
    assert jnp.allclose(err, re, rtol=1e-3, atol=1e-3)

    print("KERNEL_OK")
</pallas_src>

<mosaic_0001>
module attributes {stable_mosaic.version = 11 : i64} {
  func.func @_fused_kernel(%arg0: memref<1x128xf32, #tpu.memory_space<vmem>>, %arg1: memref<32x3xf32, #tpu.memory_space<vmem>>, %arg2: memref<32x32xf32, #tpu.memory_space<vmem>>, %arg3: memref<1x32xf32, #tpu.memory_space<vmem>>, %arg4: memref<128x128xf32, #tpu.memory_space<vmem>>, %arg5: memref<128x128xf32, #tpu.memory_space<vmem>>, %arg6: memref<128x128xf32, #tpu.memory_space<vmem>>, %arg7: memref<7xf32, #tpu.memory_space<smem>>, %arg8: memref<2x128xf32, #tpu.memory_space<vmem>>) attributes {dimension_semantics = [], scalar_prefetch = 0 : i64, scratch_operands = 0 : i64, tpu.core_type = #tpu.core_type<tc>} {
    %c0 = arith.constant 0 : index
    %c0_0 = arith.constant 0 : index
    %0 = vector.load %arg0[%c0, %c0_0] : memref<1x128xf32, #tpu.memory_space<vmem>>, vector<1x128xf32>
    %c0_1 = arith.constant 0 : index
    %c0_2 = arith.constant 0 : index
    %1 = vector.load %arg1[%c0_1, %c0_2] : memref<32x3xf32, #tpu.memory_space<vmem>>, vector<32x3xf32>
    %2 = vector.extract_strided_slice %1 {offsets = [0, 0], sizes = [32, 1], strides = [1, 1]} : vector<32x3xf32> to vector<32x1xf32>
    %3 = vector.extract_strided_slice %1 {offsets = [0, 1], sizes = [32, 1], strides = [1, 1]} : vector<32x3xf32> to vector<32x1xf32>
    %4 = vector.extract_strided_slice %1 {offsets = [0, 2], sizes = [32, 1], strides = [1, 1]} : vector<32x3xf32> to vector<32x1xf32>
    %c0_3 = arith.constant 0 : index
    %5 = memref.load %arg7[%c0_3] : memref<7xf32, #tpu.memory_space<smem>>
    %c1 = arith.constant 1 : index
    %6 = memref.load %arg7[%c1] : memref<7xf32, #tpu.memory_space<smem>>
    %c2 = arith.constant 2 : index
    %7 = memref.load %arg7[%c2] : memref<7xf32, #tpu.memory_space<smem>>
    %c3 = arith.constant 3 : index
    %8 = memref.load %arg7[%c3] : memref<7xf32, #tpu.memory_space<smem>>
    %c4 = arith.constant 4 : index
    %9 = memref.load %arg7[%c4] : memref<7xf32, #tpu.memory_space<smem>>
    %c5 = arith.constant 5 : index
    %10 = memref.load %arg7[%c5] : memref<7xf32, #tpu.memory_space<smem>>
    %c6 = arith.constant 6 : index
    %11 = memref.load %arg7[%c6] : memref<7xf32, #tpu.memory_space<smem>>
    %cst = arith.constant 1.000000e+00 : f32
    %12 = arith.divf %cst, %11 : f32
    %13 = vector.broadcast %2 : vector<32x1xf32> to vector<32x128xf32>
    %14 = vector.broadcast %0 : vector<1x128xf32> to vector<32x128xf32>
    %15 = arith.mulf %13, %14 : vector<32x128xf32>
    %16 = vector.broadcast %3 : vector<32x1xf32> to vector<32x128xf32>
    %17 = arith.addf %15, %16 : vector<32x128xf32>
    %18 = math.tanh %17 : vector<32x128xf32>
    %c0_4 = arith.constant 0 : index
    %c0_5 = arith.constant 0 : index
    %19 = vector.load %arg2[%c0_4, %c0_5] : memref<32x32xf32, #tpu.memory_space<vmem>>, vector<32x32xf32>
    %cst_6 = arith.constant dense<0.000000e+00> : vector<32x128xf32>
    %20 = tpu.matmul %19, %18, %cst_6 {dimension_numbers = #tpu.dot_dimension_numbers<[1], [0], [0], [1], [0, 0, 1, 1], [], []>} : vector<32x32xf32>, vector<32x128xf32>, vector<32x128xf32> -> vector<32x128xf32>
    %21 = vector.broadcast %4 : vector<32x1xf32> to vector<32x128xf32>
    %22 = arith.addf %20, %21 : vector<32x128xf32>
    %23 = math.tanh %22 : vector<32x128xf32>
    %c0_7 = arith.constant 0 : index
    %c0_8 = arith.constant 0 : index
    %24 = vector.load %arg3[%c0_7, %c0_8] : memref<1x32xf32, #tpu.memory_space<vmem>>, vector<1x32xf32>
    %cst_9 = arith.constant dense<0.000000e+00> : vector<1x128xf32>
    %25 = tpu.matmul %24, %23, %cst_9 {dimension_numbers = #tpu.dot_dimension_numbers<[1], [0], [0], [1], [0, 0, 1, 1], [], []>} : vector<1x32xf32>, vector<32x128xf32>, vector<1x128xf32> -> vector<1x128xf32>
    %26 = vector.broadcast %5 : f32 to vector<1x128xf32>
    %27 = arith.addf %25, %26 : vector<1x128xf32>
    %c0_10 = arith.constant 0 : index
    %c0_11 = arith.constant 0 : index
    %28 = vector.load %arg8[%c0_10, %c0_11] : memref<2x128xf32, #tpu.memory_space<vmem>>, vector<1x128xf32>
    tpu.vector_store %arg8[%c0_10, %c0_11], %27 {strides = array<i32>} : memref<2x128xf32, #tpu.memory_space<vmem>>, vector<1x128xf32>,
    %c0_12 = arith.constant 0 : index
    %c0_13 = arith.constant 0 : index
    %29 = vector.load %arg4[%c0_12, %c0_13] : memref<128x128xf32, #tpu.memory_space<vmem>>, vector<128x128xf32>
    %cst_14 = arith.constant dense<0.000000e+00> : vector<1x128xf32>
    %30 = tpu.matmul %27, %29, %cst_14 {dimension_numbers = #tpu.dot_dimension_numbers<[1], [1], [0], [0], [0, 0, 1, 0], [], []>} : vector<1x128xf32>, vector<128x128xf32>, vector<1x128xf32> -> vector<1x128xf32>
    %31 = vector.broadcast %10 : f32 to vector<1x128xf32>
    %32 = arith.mulf %30, %31 : vector<1x128xf32>
    %33 = vector.broadcast %12 : f32 to vector<1x128xf32>
    %34 = arith.mulf %32, %33 : vector<1x128xf32>
    %35 = vector.broadcast %9 : f32 to vector<1x128xf32>
    %36 = arith.mulf %0, %35 : vector<1x128xf32>
    %37 = vector.broadcast %6 : f32 to vector<1x128xf32>
    %38 = arith.mulf %37, %34 : vector<1x128xf32>
    %39 = arith.subf %36, %38 : vector<1x128xf32>
    %40 = vector.broadcast %7 : f32 to vector<1x128xf32>
    %41 = arith.mulf %40, %27 : vector<1x128xf32>
    %42 = arith.subf %39, %41 : vector<1x128xf32>
    %43 = vector.broadcast %8 : f32 to vector<1x128xf32>
    %44 = arith.mulf %43, %27 : vector<1x128xf32>
    %45 = arith.mulf %44, %27 : vector<1x128xf32>
    %46 = arith.mulf %45, %27 : vector<1x128xf32>
    %47 = arith.subf %42, %46 : vector<1x128xf32>
    %c0_15 = arith.constant 0 : index
    %c0_16 = arith.constant 0 : index
    %48 = vector.load %arg6[%c0_15, %c0_16] : memref<128x128xf32, #tpu.memory_space<vmem>>, vector<128x128xf32>
    %cst_17 = arith.constant dense<0.000000e+00> : vector<1x128xf32>
    %49 = tpu.matmul %34, %48, %cst_17 {dimension_numbers = #tpu.dot_dimension_numbers<[1], [1], [0], [0], [0, 0, 1, 0], [], []>} : vector<1x128xf32>, vector<128x128xf32>, vector<1x128xf32> -> vector<1x128xf32>
    %c0_18 = arith.constant 0 : index
    %c0_19 = arith.constant 0 : index
    %50 = vector.load %arg5[%c0_18, %c0_19] : memref<128x128xf32, #tpu.memory_space<vmem>>, vector<128x128xf32>
    %cst_20 = arith.constant dense<0.000000e+00> : vector<1x128xf32>
    %51 = tpu.matmul %47, %50, %cst_20 {dimension_numbers = #tpu.dot_dimension_numbers<[1], [1], [0], [0], [0, 0, 1, 0], [], []>} : vector<1x128xf32>, vector<128x128xf32>, vector<1x128xf32> -> vector<1x128xf32>
    %52 = vector.broadcast %12 : f32 to vector<1x128xf32>
    %53 = arith.mulf %51, %52 : vector<1x128xf32>
    %54 = arith.addf %53, %49 : vector<1x128xf32>
    %55 = arith.subf %54, %34 : vector<1x128xf32>
    %c1_21 = arith.constant 1 : index
    %c0_22 = arith.constant 0 : index
    %56 = vector.load %arg8[%c1_21, %c0_22] : memref<2x128xf32, #tpu.memory_space<vmem>>, vector<1x128xf32>
    tpu.vector_store %arg8[%c1_21, %c0_22], %55 {strides = array<i32>} : memref<2x128xf32, #tpu.memory_space<vmem>>, vector<1x128xf32>,
    return
  }
}

</mosaic_0001>

<llo_original>
// kernel: squeeze.3
$region0: #{squeeze.3}
  %s0 = inlined_call_operand.vmem [shape: f32[128], index: 0, kind: input, shape index: {}]
  %s1 = inlined_call_operand.hbm [shape: f32[8,16,1], index: 1, kind: output, shape index: {}]
  $region1: #{squeeze.3} parent=0
    #allocation0 [shape = 'u8[4096]{0}', space=vmem, size = 0x1000, scoped, tag = 'operand span for operand 1']
    #allocation1 [shape = 's32[1]{0}', space=sflag, size = 0x4, scoped, tag = 'scoped memory for squeeze.3']
    #allocation2 [shape = 'u8[4096]{0}', space=vmem, size = 0x1000, scoped, tag = 'scoped mem for input reshape']
    %2 = vsyncpa [#allocation1], 0
    %s4 = sshll.u32 1, 1
    %s5 = ssub.s32 %s4, 1
    %v6 = vld [vmem:[%s0] sm:%s5]
    %7 = vst [vmem:[#allocation2] sm:%s5] %v6
    %v8 = vld [vmem:[#allocation2] sm:$0x1]
    %vm9 = vcmask 130048
    %10 = vst.msk [vmem:[#allocation0] sm:$0x1] %vm9, %v8
    %v11 = vld [vmem:[#allocation2] sm:$0x1]
    %12 = vrot.lane.b32.xlu0 %v11, 112
    %v13 = vpop.permute.xlu0 %12
    %vm14 = vcmask 130048
    %s15 = scalar_lea.vmem [#allocation0], 1
    %16 = vst.msk [vmem:[%s15] sm:$0x1] %vm14, %v13
    %v17 = vld [vmem:[#allocation2] sm:$0x1]
    %18 = vrot.lane.b32.xlu0 %v17, 96
    %v19 = vpop.permute.xlu0 %18
    %vm20 = vcmask 130048
    %s21 = scalar_lea.vmem [#allocation0], 2
    %22 = vst.msk [vmem:[%s21] sm:$0x1] %vm20, %v19
    %v23 = vld [vmem:[#allocation2] sm:$0x1]
    %24 = vrot.lane.b32.xlu0 %v23, 80
    %v25 = vpop.permute.xlu0 %24
    %vm26 = vcmask 130048
    %s27 = scalar_lea.vmem [#allocation0], 3
    %28 = vst.msk [vmem:[%s27] sm:$0x1] %vm26, %v25
    %v29 = vld [vmem:[#allocation2] sm:$0x1]
    %30 = vrot.lane.b32.xlu0 %v29, 64
    %v31 = vpop.permute.xlu0 %30
    %vm32 = vcmask 130048
    %s33 = scalar_lea.vmem [#allocation0], 4
    %34 = vst.msk [vmem:[%s33] sm:$0x1] %vm32, %v31
    %v35 = vld [vmem:[#allocation2] sm:$0x1]
    %36 = vrot.lane.b32.xlu0 %v35, 48
    %v37 = vpop.permute.xlu0 %36
    %vm38 = vcmask 130048
    %s39 = scalar_lea.vmem [#allocation0], 5
    %40 = vst.msk [vmem:[%s39] sm:$0x1] %vm38, %v37
    %v41 = vld [vmem:[#allocation2] sm:$0x1]
    %42 = vrot.lane.b32.xlu0 %v41, 32
    %v43 = vpop.permute.xlu0 %42
    %vm44 = vcmask 130048
    %s45 = scalar_lea.vmem [#allocation0], 6
    %46 = vst.msk [vmem:[%s45] sm:$0x1] %vm44, %v43
    %v47 = vld [vmem:[#allocation2] sm:$0x1]
    %48 = vrot.lane.b32.xlu0 %v47, 16
    %v49 = vpop.permute.xlu0 %48
    %vm50 = vcmask 130048
    %s51 = scalar_lea.vmem [#allocation0], 7
    %52 = vst.msk [vmem:[%s51] sm:$0x1] %vm50, %v49
    %s54 = ssub.s32 128, 128
    %55 = vsyncadd [#allocation1], %s54
    %s57 = sshll.u32 [#allocation0], 4
    %s58 = int_to_ptr.vmem [resolvable:$true] %s57
    %60 = dma.vmem_to_hbm [thread:$0]  %s58, 128, %s1, [#allocation1]
    %61 = dma.done [#allocation1], 128
    %62 = vsyncpa [#allocation1], 1

// kernel: physics_network_forward.1
$region0: #{physics_network_forward.1}
  #allocation0 [shape = 'u32[]', space=smem, size = 0x4, offset = 0x4, fixed_abs, tag = 'smem constant byte address 0x4 - core index']
  #allocation1 [shape = 'u32[144,128]{1,0:T(1,128)}', space=vmem, size = 0x12000, scoped, tag = 'internal scratch']
  %s0 = inlined_call_operand.vmem [shape: f32[1,128], index: 0, kind: input, shape index: {}]
  %s1 = inlined_call_operand.vmem [shape: f32[32,3], index: 1, kind: input, shape index: {}]
  %s2 = inlined_call_operand.vmem [shape: f32[32,32], index: 2, kind: input, shape index: {}]
  %s3 = inlined_call_operand.vmem [shape: f32[1,32], index: 3, kind: input, shape index: {}]
  %s4 = inlined_call_operand.hbm [shape: f32[128,128], index: 4, kind: input, shape index: {}]
  %s5 = inlined_call_operand.hbm [shape: f32[128,128], index: 5, kind: input, shape index: {}]
  %s6 = inlined_call_operand.hbm [shape: f32[128,128], index: 6, kind: input, shape index: {}]
  %s7 = inlined_call_operand.vmem [shape: f32[7], index: 7, kind: input, shape index: {}]
  %s8 = inlined_call_operand.vmem [shape: f32[2,128], index: 8, kind: output, shape index: {}]
  %s9 = sld [smem:[#allocation0]]
  $region58: #{physics_network_forward.1} parent=0
    _
  %s11 = ssub.s32 1, %s9
  %s12 = scalar_select 0, %s11, %s9
  $region1: #{physics_network_forward.1} parent=0
    #allocation2 [shape = 'u8[65536]{0}', space=vmem, size = 0x10000, scoped, tag = 'input window, operand 4, single buffered']
    #allocation3 [shape = 's32[1]{0}', space=sflag, size = 0x4, scoped, tag = 'scoped memory for physics_network_forward.1']
    #allocation4 [shape = 's32[1]{0}', space=sflag, size = 0x4, scoped, tag = 'scoped memory for physics_network_forward.1']
    #allocation5 [shape = 'u8[65536]{0}', space=vmem, size = 0x10000, scoped, tag = 'input window, operand 5, single buffered']
    #allocation6 [shape = 's32[1]{0}', space=sflag, size = 0x4, scoped, tag = 'scoped memory for physics_network_forward.1']
    #allocation7 [shape = 'u8[65536]{0}', space=vmem, size = 0x10000, scoped, tag = 'input window, operand 6, single buffered']
    #allocation8 [shape = 'u8[512]{0}', space=smem, size = 0x200, scoped, tag = 'input window, operand 7, single buffered']
    %13 = vsyncpa [#allocation3], 0
    %14 = vsyncpa [#allocation6], 0
    %15 = vsyncpa [#allocation4], 0
    // Predicated region
    $region2: #{physics_network_forward.1} parent=1 // pred_check
      _
    $region3: #{physics_network_forward.1} parent=1 // pred_check_branch
      %17 = sbr.rel (0) target = $region5
    $region4: #{physics_network_forward.1} parent=1 // pred_region
      _
    $region5: #{physics_network_forward.1} parent=1 // pred_fallthru
      _
    // Predicated region
    $region6: #{physics_network_forward.1} parent=1 // pred_check
      _
    $region7: #{physics_network_forward.1} parent=1 // pred_check_branch
      %19 = sbr.rel (0) target = $region9
    $region8: #{physics_network_forward.1} parent=1 // pred_region
      _
    $region9: #{physics_network_forward.1} parent=1 // pred_fallthru
      _
    // Predicated region
    $region10: #{physics_network_forward.1} parent=1 // pred_check
      _
    $region11: #{physics_network_forward.1} parent=1 // pred_check_branch
      %21 = sbr.rel (0) target = $region13
    $region12: #{physics_network_forward.1} parent=1 // pred_region
      _
    $region13: #{physics_network_forward.1} parent=1 // pred_fallthru
      _
    // Predicated region
    $region14: #{physics_network_forward.1} parent=1 // pred_check
      _
    $region15: #{physics_network_forward.1} parent=1 // pred_check_branch
      %23 = sbr.rel (0) target = $region17
    $region16: #{physics_network_forward.1} parent=1 // pred_region
      _
    $region17: #{physics_network_forward.1} parent=1 // pred_fallthru
      _
    // Predicated region
    $region18: #{physics_network_forward.1} parent=1 // pred_check
      _
    $region19: #{physics_network_forward.1} parent=1 // pred_check_branch
      %25 = sbr.rel (0) target = $region21
    $region20: #{physics_network_forward.1} parent=1 // pred_region
      %s27 = ssub.s32 2048, 2048
      %28 = vsyncadd [#allocation3], %s27
      %s29 = sshll.u32 [#allocation2], 4
      %s30 = int_to_ptr.vmem [resolvable:$true] %s29
      %35 = dma.hbm_to_vmem [thread:$0]  %s4, 2048, %s30, [#allocation3], 128, 128, 8
    $region21: #{physics_network_forward.1} parent=1 // pred_fallthru
      _
    // Predicated region
    $region22: #{physics_network_forward.1} parent=1 // pred_check
      _
    $region23: #{physics_network_forward.1} parent=1 // pred_check_branch
      %37 = sbr.rel (0) target = $region25
    $region24: #{physics_network_forward.1} parent=1 // pred_region
      %s39 = ssub.s32 2048, 2048
      %40 = vsyncadd [#allocation6], %s39
      %s41 = sshll.u32 [#allocation5], 4
      %s42 = int_to_ptr.vmem [resolvable:$true] %s41
      %47 = dma.hbm_to_vmem [thread:$0]  %s5, 2048, %s42, [#allocation6], 128, 128, 8
    $region25: #{physics_network_forward.1} parent=1 // pred_fallthru
      _
    // Predicated region
    $region26: #{physics_network_forward.1} parent=1 // pred_check
      _
    $region27: #{physics_network_forward.1} parent=1 // pred_check_branch
      %49 = sbr.rel (0) target = $region29
    $region28: #{physics_network_forward.1} parent=1 // pred_region
      %s51 = ssub.s32 2048, 2048
      %52 = vsyncadd [#allocation6], %s51
      %s53 = sshll.u32 [#allocation7], 4
      %s54 = int_to_ptr.vmem [resolvable:$true] %s53
      %59 = dma.hbm_to_vmem [thread:$0]  %s6, 2048, %s54, [#allocation6], 128, 128, 8
    $region29: #{physics_network_forward.1} parent=1 // pred_fallthru
      _
    // Predicated region
    $region30: #{physics_network_forward.1} parent=1 // pred_check
      _
    $region31: #{physics_network_forward.1} parent=1 // pred_check_branch
      %61 = sbr.rel (0) target = $region33
    $region32: #{physics_network_forward.1} parent=1 // pred_region
      %s63 = ssub.s32 16, 16
      %64 = vsyncadd [#allocation4], %s63
      %s66 = sshll.u32 %s7, 4
      %s67 = int_to_ptr.vmem [resolvable:$true] %s66
      %69 = dma.vmem_to_smem %s67, 16, [#allocation8], [#allocation4]
    $region33: #{physics_network_forward.1} parent=1 // pred_fallthru
      _
    // Predicated region
    $region34: #{physics_network_forward.1} parent=1 // pred_check
      _
    $region35: #{physics_network_forward.1} parent=1 // pred_check_branch
      %71 = sbr.rel (0) target = $region37
    $region36: #{physics_network_forward.1} parent=1 // pred_region
      %72 = dma.done [#allocation3], 2048
    $region37: #{physics_network_forward.1} parent=1 // pred_fallthru
      _
    // Predicated region
    $region38: #{physics_network_forward.1} parent=1 // pred_check
      _
    $region39: #{physics_network_forward.1} parent=1 // pred_check_branch
      %74 = sbr.rel (0) target = $region41
    $region40: #{physics_network_forward.1} parent=1 // pred_region
      %75 = dma.done [#allocation6], 2048
    $region41: #{physics_network_forward.1} parent=1 // pred_fallthru
      _
    // Predicated region
    $region42: #{physics_network_forward.1} parent=1 // pred_check
      _
    $region43: #{physics_network_forward.1} parent=1 // pred_check_branch
      %77 = sbr.rel (0) target = $region45
    $region44: #{physics_network_forward.1} parent=1 // pred_region
      %78 = dma.done [#allocation6], 2048
    $region45: #{physics_network_forward.1} parent=1 // pred_fallthru
      _
    // Predicated region
    $region46: #{physics_network_forward.1} parent=1 // pred_check
      _
    $region47: #{physics_network_forward.1} parent=1 // pred_check_branch
      %80 = sbr.rel (0) target = $region49
    $region48: #{physics_network_forward.1} parent=1 // pred_region
      %81 = dma.done [#allocation4], 16
    $region49: #{physics_network_forward.1} parent=1 // pred_fallthru
      _
    %82 = sfence
    %v83 = vld [vmem:[%s0] sm:$0x1]
    %v84 = vld [vmem:[%s1] sm:$0xff]
    %v85 = vld [vmem:[%s1 + $0x8] sm:$0xff]
    %v86 = vld [vmem:[%s1 + $0x10] sm:$0xff]
    %v87 = vld [vmem:[%s1 + $0x18] sm:$0xff]
    %s88 = sld [smem:[#allocation8]]
    %s89 = sld [smem:[#allocation8 + $0x1]]
    %s90 = sld [smem:[#allocation8 + $0x2]]
    %s91 = sld [smem:[#allocation8 + $0x3]]
    %s92 = sld [smem:[#allocation8 + $0x4]]
    %s93 = sld [smem:[#allocation8 + $0x5]]
    %s94 = sld [smem:[#allocation8 + $0x6]]
    %v95 = vstv %s94
    %v96 = vrcp.pop %v95
    %s97 = vtos %v96
    %99 = vset.pattern.permute.xlu0 0
    %100 = vperm.xlu0 %99, %v84
    %v101 = vpop.permute.xlu0 %100
    %104 = vset.pattern.permute.xlu0 0
    %105 = vperm.xlu0 %104, %v85
    %v106 = vpop.permute.xlu0 %105
    %109 = vset.pattern.permute.xlu0 0
    %110 = vperm.xlu0 %109, %v86
    %v111 = vpop.permute.xlu0 %110
    %114 = vset.pattern.permute.xlu0 0
    %115 = vperm.xlu0 %114, %v87
    %v116 = vpop.permute.xlu0 %115
    %v119 = vlaneseq
    %v120 = vshrl.u32 %v119, 7
    %v121 = vsub.s32 0, %v120
    %v122 = vrot.slane %v83, %v121
    %v124 = vmul.f32 %v101, %v122
    %v125 = vmul.f32 %v106, %v122
    %v126 = vmul.f32 %v111, %v122
    %v127 = vmul.f32 %v116, %v122
    %128 = vset.pattern.permute.xlu0 1
    %129 = vperm.xlu0 %128, %v84
    %v130 = vpop.permute.xlu0 %129
    %132 = vset.pattern.permute.xlu0 1
    %133 = vperm.xlu0 %132, %v85
    %v134 = vpop.permute.xlu0 %133
    %136 = vset.pattern.permute.xlu0 1
    %137 = vperm.xlu0 %136, %v86
    %v138 = vpop.permute.xlu0 %137
    %140 = vset.pattern.permute.xlu0 1
    %141 = vperm.xlu0 %140, %v87
    %v142 = vpop.permute.xlu0 %141
    %v144 = vadd.f32 %v124, %v130
    %v145 = vadd.f32 %v125, %v134
    %v146 = vadd.f32 %v126, %v138
    %v147 = vadd.f32 %v127, %v142
    %v148 = vtanh.pop %v144
    %v149 = vtanh.pop %v145
    %v150 = vtanh.pop %v146
    %v151 = vtanh.pop %v147
    %v152 = vld [vmem:[%s2] sm:$0xff]
    %v153 = vld [vmem:[%s2 + $0x8] sm:$0xff]
    %v154 = vld [vmem:[%s2 + $0x10] sm:$0xff]
    %v155 = vld [vmem:[%s2 + $0x18] sm:$0xff]
    %156 = vset.pattern.permute.xlu0 2
    %157 = vperm.xlu0 %156, %v84
    %v158 = vpop.permute.xlu0 %157
    %160 = vset.pattern.permute.xlu0 2
    %161 = vperm.xlu0 %160, %v85
    %v162 = vpop.permute.xlu0 %161
    %164 = vset.pattern.permute.xlu0 2
    %165 = vperm.xlu0 %164, %v86
    %v166 = vpop.permute.xlu0 %165
    %168 = vset.pattern.permute.xlu0 2
    %169 = vperm.xlu0 %168, %v87
    %v170 = vpop.permute.xlu0 %169
    %vm172 = vcmask 261120
    %v174 = vsel %vm172, %v152, 0
    %v177 = vsel %vm172, %v153, 0
    %v180 = vsel %vm172, %v154, 0
    %v183 = vsel %vm172, %v155, 0
    %185 = vmatprep.subr.mxu0 0.0
    %186 = vmatpush1.msra.mxu0 0.0
    %187 = vmatprep.subr.mxu0 0.0
    %188 = vmatpush1.msra.mxu0 0.0
    %189 = vmatprep.subr.mxu0 0.0
    %190 = vmatpush1.msra.mxu0 0.0
    %191 = vmatprep.subr.mxu0 0.0
    %192 = vmatpush1.msra.mxu0 0.0
    %193 = vmatprep.subr.mxu0 0.0
    %194 = vmatpush1.msra.mxu0 0.0
    %195 = vmatprep.subr.mxu0 0.0
    %196 = vmatpush1.msra.mxu0 0.0
    %197 = vmatprep.subr.mxu0 0.0
    %198 = vmatpush1.msra.mxu0 0.0
    %199 = vmatprep.subr.mxu0 0.0
    %200 = vmatpush1.msra.mxu0 0.0
    %201 = vmatprep.subr.mxu0 0.0
    %202 = vmatpush1.msra.mxu0 0.0
    %203 = vmatprep.subr.mxu0 0.0
    %204 = vmatpush1.msra.mxu0 0.0
    %205 = vmatprep.subr.mxu0 0.0
    %206 = vmatpush1.msra.mxu0 0.0
    %207 = vmatprep.subr.mxu0 0.0
    %208 = vmatpush1.msra.mxu0 0.0
    %209 = vmatprep.subr.mxu0 0.0
    %210 = vmatpush1.msra.mxu0 %v151
    %211 = vmatprep.subr.mxu0 0.0
    %212 = vmatpush1.msra.mxu0 %v150
    %213 = vmatprep.subr.mxu0 0.0
    %214 = vmatpush1.msra.mxu0 %v149
    %215 = vmatprep.subr.mxu0 0.0
    %216 = vmatpush1.msra.mxu0 %v148
    %217 = vmatprep.subr.mxu0 0.0
    %218 = vmatpush2.msra.mxu0 0.0
    %219 = vmatprep.subr.mxu0 0.0
    %220 = vmatpush2.msra.mxu0 0.0
    %221 = vmatprep.subr.mxu0 0.0
    %222 = vmatpush2.msra.mxu0 0.0
    %223 = vmatprep.subr.mxu0 0.0
    %224 = vmatpush2.msra.mxu0 0.0
    %225 = vmatprep.subr.mxu0 0.0
    %226 = vmatpush2.msra.mxu0 0.0
    %227 = vmatprep.subr.mxu0 0.0
    %228 = vmatpush2.msra.mxu0 0.0
    %229 = vmatprep.subr.mxu0 0.0
    %230 = vmatpush2.msra.mxu0 0.0
    %231 = vmatprep.subr.mxu0 0.0
    %232 = vmatpush2.msra.mxu0 0.0
    %233 = vmatprep.subr.mxu0 0.0
    %234 = vmatpush2.msra.mxu0 0.0
    %235 = vmatprep.subr.mxu0 0.0
    %236 = vmatpush2.msra.mxu0 0.0
    %237 = vmatprep.subr.mxu0 0.0
    %238 = vmatpush2.msra.mxu0 0.0
    %239 = vmatprep.subr.mxu0 0.0
    %240 = vmatpush2.msra.mxu0 0.0
    %241 = vmatprep.subr.mxu0 0.0
    %242 = vmatpush2.msra.mxu0 0.0
    %243 = vmatprep.subr.mxu0 0.0
    %244 = vmatpush2.msra.mxu0 0.0
    %245 = vmatprep.subr.mxu0 0.0
    %246 = vmatpush2.msra.mxu0 0.0
    %247 = vmatprep.subr.mxu0 0.0
    %248 = vmatpush2.msra.mxu0 0.0
    %249 = vmatprep.mubr.f32.mxu0 0.0
    %250 = vmatmul.mubr.f32.gmra.mxu0 %v174
    %v251 = vpop.f32.mrf.mxu0
    %v252 = vadd.f32 %v158, %v251
    %v253 = vpop.f32.mrf.mxu0
    %254 = vmatprep.mubr.f32.mxu0 0.0
    %255 = vmatmul.mubr.f32.gmra.mxu0 %v177
    %v256 = vpop.f32.mrf.mxu0
    %v257 = vadd.f32 %v162, %v256
    %v258 = vpop.f32.mrf.mxu0
    %259 = vmatprep.mubr.f32.mxu0 0.0
    %260 = vmatmul.mubr.f32.gmra.mxu0 %v180
    %v261 = vpop.f32.mrf.mxu0
    %v262 = vadd.f32 %v166, %v261
    %v263 = vpop.f32.mrf.mxu0
    %264 = vmatprep.mubr.f32.mxu0 0.0
    %265 = vmatmul.mubr.f32.gmra.mxu0 %v183
    %v266 = vpop.f32.mrf.mxu0
    %v267 = vadd.f32 %v170, %v266
    %v268 = vpop.f32.mrf.mxu0
    %269 = vdwg.mxu0
    %v270 = vtanh.pop %v252
    %v271 = vtanh.pop %v257
    %v272 = vtanh.pop %v262
    %v273 = vtanh.pop %v267
    %v274 = vld [vmem:[%s3] sm:$0x1]
    %v275 = vstv %s88
    %v277 = vsel %vm172, %v274, 0
    %279 = vmatprep.subr.mxu0 0.0
    %280 = vmatpush1.msra.mxu0 0.0
    %281 = vmatprep.subr.mxu0 0.0
    %282 = vmatpush1.msra.mxu0 0.0
    %283 = vmatprep.subr.mxu0 0.0
    %284 = vmatpush1.msra.mxu0 0.0
    %285 = vmatprep.subr.mxu0 0.0
    %286 = vmatpush1.msra.mxu0 0.0
    %287 = vmatprep.subr.mxu0 0.0
    %288 = vmatpush1.msra.mxu0 0.0
    %289 = vmatprep.subr.mxu0 0.0
    %290 = vmatpush1.msra.mxu0 0.0
    %291 = vmatprep.subr.mxu0 0.0
    %292 = vmatpush1.msra.mxu0 0.0
    %293 = vmatprep.subr.mxu0 0.0
    %294 = vmatpush1.msra.mxu0 0.0
    %295 = vmatprep.subr.mxu0 0.0
    %296 = vmatpush1.msra.mxu0 0.0
    %297 = vmatprep.subr.mxu0 0.0
    %298 = vmatpush1.msra.mxu0 0.0
    %299 = vmatprep.subr.mxu0 0.0
    %300 = vmatpush1.msra.mxu0 0.0
    %301 = vmatprep.subr.mxu0 0.0
    %302 = vmatpush1.msra.mxu0 0.0
    %303 = vmatprep.subr.mxu0 0.0
    %304 = vmatpush1.msra.mxu0 %v273
    %305 = vmatprep.subr.mxu0 0.0
    %306 = vmatpush1.msra.mxu0 %v272
    %307 = vmatprep.subr.mxu0 0.0
    %308 = vmatpush1.msra.mxu0 %v271
    %309 = vmatprep.subr.mxu0 0.0
    %310 = vmatpush1.msra.mxu0 %v270
    %311 = vmatprep.subr.mxu0 0.0
    %312 = vmatpush2.msra.mxu0 0.0
    %313 = vmatprep.subr.mxu0 0.0
    %314 = vmatpush2.msra.mxu0 0.0
    %315 = vmatprep.subr.mxu0 0.0
    %316 = vmatpush2.msra.mxu0 0.0
    %317 = vmatprep.subr.mxu0 0.0
    %318 = vmatpush2.msra.mxu0 0.0
    %319 = vmatprep.subr.mxu0 0.0
    %320 = vmatpush2.msra.mxu0 0.0
    %321 = vmatprep.subr.mxu0 0.0
    %322 = vmatpush2.msra.mxu0 0.0
    %323 = vmatprep.subr.mxu0 0.0
    %324 = vmatpush2.msra.mxu0 0.0
    %325 = vmatprep.subr.mxu0 0.0
    %326 = vmatpush2.msra.mxu0 0.0
    %327 = vmatprep.subr.mxu0 0.0
    %328 = vmatpush2.msra.mxu0 0.0
    %329 = vmatprep.subr.mxu0 0.0
    %330 = vmatpush2.msra.mxu0 0.0
    %331 = vmatprep.subr.mxu0 0.0
    %332 = vmatpush2.msra.mxu0 0.0
    %333 = vmatprep.subr.mxu0 0.0
    %334 = vmatpush2.msra.mxu0 0.0
    %335 = vmatprep.subr.mxu0 0.0
    %336 = vmatpush2.msra.mxu0 0.0
    %337 = vmatprep.subr.mxu0 0.0
    %338 = vmatpush2.msra.mxu0 0.0
    %339 = vmatprep.subr.mxu0 0.0
    %340 = vmatpush2.msra.mxu0 0.0
    %341 = vmatprep.subr.mxu0 0.0
    %342 = vmatpush2.msra.mxu0 0.0
    %343 = vmatprep.mubr.f32.mxu0 0.0
    %344 = vmatmul.mubr.f32.gmra.mxu0 %v277
    %v345 = vpop.f32.mrf.mxu0
    %v346 = vadd.f32 %v275, %v345
    %v347 = vpop.f32.mrf.mxu0
    %348 = vdwg.mxu0
    %349 = vst [vmem:[%s8] sm:$0x1] %v346
    %v350 = vld [vmem:[#allocation2] sm:$0xff]
    %v351 = vld [vmem:[#allocation2 + $0x8] sm:$0xff]
    %v352 = vld [vmem:[#allocation2 + $0x10] sm:$0xff]
    %v353 = vld [vmem:[#allocation2 + $0x18] sm:$0xff]
    %v354 = vld [vmem:[#allocation2 + $0x20] sm:$0xff]
    %v355 = vld [vmem:[#allocation2 + $0x28] sm:$0xff]
    %v356 = vld [vmem:[#allocation2 + $0x30] sm:$0xff]
    %v357 = vld [vmem:[#allocation2 + $0x38] sm:$0xff]
    %v358 = vld [vmem:[#allocation2 + $0x40] sm:$0xff]
    %v359 = vld [vmem:[#allocation2 + $0x48] sm:$0xff]
    %v360 = vld [vmem:[#allocation2 + $0x50] sm:$0xff]
    %v361 = vld [vmem:[#allocation2 + $0x58] sm:$0xff]
    %v362 = vld [vmem:[#allocation2 + $0x60] sm:$0xff]
    %v363 = vld [vmem:[#allocation2 + $0x68] sm:$0xff]
    %v364 = vld [vmem:[#allocation2 + $0x70] sm:$0xff]
    %v365 = vld [vmem:[#allocation2 + $0x78] sm:$0xff]
    %366 = vmatprep.subr.mxu0 0.0
    %367 = vmatpush1.xpose.msra.mxu0 %v365
    %368 = vmatprep.subr.mxu0 0.0
    %369 = vmatpush1.xpose.msra.mxu0 %v364
    %370 = vmatprep.subr.mxu0 0.0
    %371 = vmatpush1.xpose.msra.mxu0 %v363
    %372 = vmatprep.subr.mxu0 0.0
    %373 = vmatpush1.xpose.msra.mxu0 %v362
    %374 = vmatprep.subr.mxu0 0.0
    %375 = vmatpush1.xpose.msra.mxu0 %v361
    %376 = vmatprep.subr.mxu0 0.0
    %377 = vmatpush1.xpose.msra.mxu0 %v360
    %378 = vmatprep.subr.mxu0 0.0
    %379 = vmatpush1.xpose.msra.mxu0 %v359
    %380 = vmatprep.subr.mxu0 0.0
    %381 = vmatpush1.xpose.msra.mxu0 %v358
    %382 = vmatprep.subr.mxu0 0.0
    %383 = vmatpush1.xpose.msra.mxu0 %v357
    %384 = vmatprep.subr.mxu0 0.0
    %385 = vmatpush1.xpose.msra.mxu0 %v356
    %386 = vmatprep.subr.mxu0 0.0
    %387 = vmatpush1.xpose.msra.mxu0 %v355
    %388 = vmatprep.subr.mxu0 0.0
    %389 = vmatpush1.xpose.msra.mxu0 %v354
    %390 = vmatprep.subr.mxu0 0.0
    %391 = vmatpush1.xpose.msra.mxu0 %v353
    %392 = vmatprep.subr.mxu0 0.0
    %393 = vmatpush1.xpose.msra.mxu0 %v352
    %394 = vmatprep.subr.mxu0 0.0
    %395 = vmatpush1.xpose.msra.mxu0 %v351
    %396 = vmatprep.subr.mxu0 0.0
    %397 = vmatpush1.xpose.msra.mxu0 %v350
    %398 = vmatprep.subr.mxu0 0.0
    %399 = vmatpush2.xpose.msra.mxu0 0.0
    %400 = vmatprep.subr.mxu0 0.0
    %401 = vmatpush2.xpose.msra.mxu0 0.0
    %402 = vmatprep.subr.mxu0 0.0
    %403 = vmatpush2.xpose.msra.mxu0 0.0
    %404 = vmatprep.subr.mxu0 0.0
    %405 = vmatpush2.xpose.msra.mxu0 0.0
    %406 = vmatprep.subr.mxu0 0.0
    %407 = vmatpush2.xpose.msra.mxu0 0.0
    %408 = vmatprep.subr.mxu0 0.0
    %409 = vmatpush2.xpose.msra.mxu0 0.0
    %410 = vmatprep.subr.mxu0 0.0
    %411 = vmatpush2.xpose.msra.mxu0 0.0
    %412 = vmatprep.subr.mxu0 0.0
    %413 = vmatpush2.xpose.msra.mxu0 0.0
    %414 = vmatprep.subr.mxu0 0.0
    %415 = vmatpush2.xpose.msra.mxu0 0.0
    %416 = vmatprep.subr.mxu0 0.0
    %417 = vmatpush2.xpose.msra.mxu0 0.0
    %418 = vmatprep.subr.mxu0 0.0
    %419 = vmatpush2.xpose.msra.mxu0 0.0
    %420 = vmatprep.subr.mxu0 0.0
    %421 = vmatpush2.xpose.msra.mxu0 0.0
    %422 = vmatprep.subr.mxu0 0.0
    %423 = vmatpush2.xpose.msra.mxu0 0.0
    %424 = vmatprep.subr.mxu0 0.0
    %425 = vmatpush2.xpose.msra.mxu0 0.0
    %426 = vmatprep.subr.mxu0 0.0
    %427 = vmatpush2.xpose.msra.mxu0 0.0
    %428 = vmatprep.subr.mxu0 0.0
    %429 = vmatpush2.xpose.msra.mxu0 0.0
    %430 = vmatprep.mubr.f32.mxu0 0.0
    %431 = vmatmul.mubr.f32.gmra.mxu0 %v346
    %v432 = vpop.f32.mrf.mxu0
    %v433 = vadd.f32 0.0, %v432
    %v434 = vpop.f32.mrf.mxu0
    %435 = vdwg.mxu0
    %v436 = vstv %s93
    %v437 = vmul.f32 %v433, %v436
    %v438 = vstv %s97
    %v439 = vmul.f32 %v437, %v438
    %v440 = vstv %s92
    %v441 = vmul.f32 %v83, %v440
    %v442 = vstv %s89
    %v443 = vmul.f32 %v442, %v439
    %v444 = vsub.f32 %v441, %v443
    %v445 = vstv %s90
    %v446 = vmul.f32 %v445, %v346
    %v447 = vsub.f32 %v444, %v446
    %v448 = vstv %s91
    %v449 = vmul.f32 %v448, %v346
    %v450 = vmul.f32 %v449, %v346
    %v451 = vmul.f32 %v450, %v346
    %v452 = vsub.f32 %v447, %v451
    %v453 = vld [vmem:[#allocation7] sm:$0xff]
    %v454 = vld [vmem:[#allocation7 + $0x8] sm:$0xff]
    %v455 = vld [vmem:[#allocation7 + $0x10] sm:$0xff]
    %v456 = vld [vmem:[#allocation7 + $0x18] sm:$0xff]
    %v457 = vld [vmem:[#allocation7 + $0x20] sm:$0xff]
    %v458 = vld [vmem:[#allocation7 + $0x28] sm:$0xff]
    %v459 = vld [vmem:[#allocation7 + $0x30] sm:$0xff]
    %v460 = vld [vmem:[#allocation7 + $0x38] sm:$0xff]
    %v461 = vld [vmem:[#allocation7 + $0x40] sm:$0xff]
    %v462 = vld [vmem:[#allocation7 + $0x48] sm:$0xff]
    %v463 = vld [vmem:[#allocation7 + $0x50] sm:$0xff]
    %v464 = vld [vmem:[#allocation7 + $0x58] sm:$0xff]
    %v465 = vld [vmem:[#allocation7 + $0x60] sm:$0xff]
    %v466 = vld [vmem:[#allocation7 + $0x68] sm:$0xff]
    %v467 = vld [vmem:[#allocation7 + $0x70] sm:$0xff]
    %v468 = vld [vmem:[#allocation7 + $0x78] sm:$0xff]
    %469 = vmatprep.subr.mxu0 0.0
    %470 = vmatpush1.xpose.msra.mxu0 %v468
    %471 = vmatprep.subr.mxu0 0.0
    %472 = vmatpush1.xpose.msra.mxu0 %v467
    %473 = vmatprep.subr.mxu0 0.0
    %474 = vmatpush1.xpose.msra.mxu0 %v466
    %475 = vmatprep.subr.mxu0 0.0
    %476 = vmatpush1.xpose.msra.mxu0 %v465
    %477 = vmatprep.subr.mxu0 0.0
    %478 = vmatpush1.xpose.msra.mxu0 %v464
    %479 = vmatprep.subr.mxu0 0.0
    %480 = vmatpush1.xpose.msra.mxu0 %v463
    %481 = vmatprep.subr.mxu0 0.0
    %482 = vmatpush1.xpose.msra.mxu0 %v462
    %483 = vmatprep.subr.mxu0 0.0
    %484 = vmatpush1.xpose.msra.mxu0 %v461
    %485 = vmatprep.subr.mxu0 0.0
    %486 = vmatpush1.xpose.msra.mxu0 %v460
    %487 = vmatprep.subr.mxu0 0.0
    %488 = vmatpush1.xpose.msra.mxu0 %v459
    %489 = vmatprep.subr.mxu0 0.0
    %490 = vmatpush1.xpose.msra.mxu0 %v458
    %491 = vmatprep.subr.mxu0 0.0
    %492 = vmatpush1.xpose.msra.mxu0 %v457
    %493 = vmatprep.subr.mxu0 0.0
    %494 = vmatpush1.xpose.msra.mxu0 %v456
    %495 = vmatprep.subr.mxu0 0.0
    %496 = vmatpush1.xpose.msra.mxu0 %v455
    %497 = vmatprep.subr.mxu0 0.0
    %498 = vmatpush1.xpose.msra.mxu0 %v454
    %499 = vmatprep.subr.mxu0 0.0
    %500 = vmatpush1.xpose.msra.mxu0 %v453
    %501 = vmatprep.subr.mxu0 0.0
    %502 = vmatpush2.xpose.msra.mxu0 0.0
    %503 = vmatprep.subr.mxu0 0.0
    %504 = vmatpush2.xpose.msra.mxu0 0.0
    %505 = vmatprep.subr.mxu0 0.0
    %506 = vmatpush2.xpose.msra.mxu0 0.0
    %507 = vmatprep.subr.mxu0 0.0
    %508 = vmatpush2.xpose.msra.mxu0 0.0
    %509 = vmatprep.subr.mxu0 0.0
    %510 = vmatpush2.xpose.msra.mxu0 0.0
    %511 = vmatprep.subr.mxu0 0.0
    %512 = vmatpush2.xpose.msra.mxu0 0.0
    %513 = vmatprep.subr.mxu0 0.0
    %514 = vmatpush2.xpose.msra.mxu0 0.0
    %515 = vmatprep.subr.mxu0 0.0
    %516 = vmatpush2.xpose.msra.mxu0 0.0
    %517 = vmatprep.subr.mxu0 0.0
    %518 = vmatpush2.xpose.msra.mxu0 0.0
    %519 = vmatprep.subr.mxu0 0.0
    %520 = vmatpush2.xpose.msra.mxu0 0.0
    %521 = vmatprep.subr.mxu0 0.0
    %522 = vmatpush2.xpose.msra.mxu0 0.0
    %523 = vmatprep.subr.mxu0 0.0
    %524 = vmatpush2.xpose.msra.mxu0 0.0
    %525 = vmatprep.subr.mxu0 0.0
    %526 = vmatpush2.xpose.msra.mxu0 0.0
    %527 = vmatprep.subr.mxu0 0.0
    %528 = vmatpush2.xpose.msra.mxu0 0.0
    %529 = vmatprep.subr.mxu0 0.0
    %530 = vmatpush2.xpose.msra.mxu0 0.0
    %531 = vmatprep.subr.mxu0 0.0
    %532 = vmatpush2.xpose.msra.mxu0 0.0
    %533 = vmatprep.mubr.f32.mxu0 0.0
    %534 = vmatmul.mubr.f32.gmra.mxu0 %v439
    %v535 = vpop.f32.mrf.mxu0
    %v536 = vadd.f32 0.0, %v535
    %v537 = vpop.f32.mrf.mxu0
    %538 = vdwg.mxu0
    %v539 = vld [vmem:[#allocation5] sm:$0xff]
    %v540 = vld [vmem:[#allocation5 + $0x8] sm:$0xff]
    %v541 = vld [vmem:[#allocation5 + $0x10] sm:$0xff]
    %v542 = vld [vmem:[#allocation5 + $0x18] sm:$0xff]
    %v543 = vld [vmem:[#allocation5 + $0x20] sm:$0xff]
    %v544 = vld [vmem:[#allocation5 + $0x28] sm:$0xff]
    %v545 = vld [vmem:[#allocation5 + $0x30] sm:$0xff]
    %v546 = vld [vmem:[#allocation5 + $0x38] sm:$0xff]
    %v547 = vld [vmem:[#allocation5 + $0x40] sm:$0xff]
    %v548 = vld [vmem:[#allocation5 + $0x48] sm:$0xff]
    %v549 = vld [vmem:[#allocation5 + $0x50] sm:$0xff]
    %v550 = vld [vmem:[#allocation5 + $0x58] sm:$0xff]
    %v551 = vld [vmem:[#allocation5 + $0x60] sm:$0xff]
    %v552 = vld [vmem:[#allocation5 + $0x68] sm:$0xff]
    %v553 = vld [vmem:[#allocation5 + $0x70] sm:$0xff]
    %v554 = vld [vmem:[#allocation5 + $0x78] sm:$0xff]
    %555 = vmatprep.subr.mxu0 0.0
    %556 = vmatpush1.xpose.msra.mxu0 %v554
    %557 = vmatprep.subr.mxu0 0.0
    %558 = vmatpush1.xpose.msra.mxu0 %v553
    %559 = vmatprep.subr.mxu0 0.0
    %560 = vmatpush1.xpose.msra.mxu0 %v552
    %561 = vmatprep.subr.mxu0 0.0
    %562 = vmatpush1.xpose.msra.mxu0 %v551
    %563 = vmatprep.subr.mxu0 0.0
    %564 = vmatpush1.xpose.msra.mxu0 %v550
    %565 = vmatprep.subr.mxu0 0.0
    %566 = vmatpush1.xpose.msra.mxu0 %v549
    %567 = vmatprep.subr.mxu0 0.0
    %568 = vmatpush1.xpose.msra.mxu0 %v548
    %569 = vmatprep.subr.mxu0 0.0
    %570 = vmatpush1.xpose.msra.mxu0 %v547
    %571 = vmatprep.subr.mxu0 0.0
    %572 = vmatpush1.xpose.msra.mxu0 %v546
    %573 = vmatprep.subr.mxu0 0.0
    %574 = vmatpush1.xpose.msra.mxu0 %v545
    %575 = vmatprep.subr.mxu0 0.0
    %576 = vmatpush1.xpose.msra.mxu0 %v544
    %577 = vmatprep.subr.mxu0 0.0
    %578 = vmatpush1.xpose.msra.mxu0 %v543
    %579 = vmatprep.subr.mxu0 0.0
    %580 = vmatpush1.xpose.msra.mxu0 %v542
    %581 = vmatprep.subr.mxu0 0.0
    %582 = vmatpush1.xpose.msra.mxu0 %v541
    %583 = vmatprep.subr.mxu0 0.0
    %584 = vmatpush1.xpose.msra.mxu0 %v540
    %585 = vmatprep.subr.mxu0 0.0
    %586 = vmatpush1.xpose.msra.mxu0 %v539
    %587 = vmatprep.subr.mxu0 0.0
    %588 = vmatpush2.xpose.msra.mxu0 0.0
    %589 = vmatprep.subr.mxu0 0.0
    %590 = vmatpush2.xpose.msra.mxu0 0.0
    %591 = vmatprep.subr.mxu0 0.0
    %592 = vmatpush2.xpose.msra.mxu0 0.0
    %593 = vmatprep.subr.mxu0 0.0
    %594 = vmatpush2.xpose.msra.mxu0 0.0
    %595 = vmatprep.subr.mxu0 0.0
    %596 = vmatpush2.xpose.msra.mxu0 0.0
    %597 = vmatprep.subr.mxu0 0.0
    %598 = vmatpush2.xpose.msra.mxu0 0.0
    %599 = vmatprep.subr.mxu0 0.0
    %600 = vmatpush2.xpose.msra.mxu0 0.0
    %601 = vmatprep.subr.mxu0 0.0
    %602 = vmatpush2.xpose.msra.mxu0 0.0
    %603 = vmatprep.subr.mxu0 0.0
    %604 = vmatpush2.xpose.msra.mxu0 0.0
    %605 = vmatprep.subr.mxu0 0.0
    %606 = vmatpush2.xpose.msra.mxu0 0.0
    %607 = vmatprep.subr.mxu0 0.0
    %608 = vmatpush2.xpose.msra.mxu0 0.0
    %609 = vmatprep.subr.mxu0 0.0
    %610 = vmatpush2.xpose.msra.mxu0 0.0
    %611 = vmatprep.subr.mxu0 0.0
    %612 = vmatpush2.xpose.msra.mxu0 0.0
    %613 = vmatprep.subr.mxu0 0.0
    %614 = vmatpush2.xpose.msra.mxu0 0.0
    %615 = vmatprep.subr.mxu0 0.0
    %616 = vmatpush2.xpose.msra.mxu0 0.0
    %617 = vmatprep.subr.mxu0 0.0
    %618 = vmatpush2.xpose.msra.mxu0 0.0
    %619 = vmatprep.mubr.f32.mxu0 0.0
    %620 = vmatmul.mubr.f32.gmra.mxu0 %v452
    %v621 = vpop.f32.mrf.mxu0
    %v622 = vadd.f32 0.0, %v621
    %v623 = vpop.f32.mrf.mxu0
    %624 = vdwg.mxu0
    %v625 = vmul.f32 %v622, %v438
    %v626 = vadd.f32 %v625, %v536
    %v627 = vsub.f32 %v626, %v439
    %628 = vst [vmem:[%s8 + $0x1] sm:$0x1] %v627
    // Predicated region
    $region50: #{physics_network_forward.1} parent=1 // pred_check
      _
    $region51: #{physics_network_forward.1} parent=1 // pred_check_branch
      %630 = sbr.rel (0) target = $region53
    $region52: #{physics_network_forward.1} parent=1 // pred_region
      _
    $region53: #{physics_network_forward.1} parent=1 // pred_fallthru
      _
    // Predicated region
    $region54: #{physics_network_forward.1} parent=1 // pred_check
      _
    $region55: #{physics_network_forward.1} parent=1 // pred_check_branch
      %632 = sbr.rel (0) target = $region57
    $region56: #{physics_network_forward.1} parent=1 // pred_region
      _
    $region57: #{physics_network_forward.1} parent=1 // pred_fallthru
      _
    %633 = vsyncpa [#allocation3], 1
    %634 = vsyncpa [#allocation6], 1
    %635 = vsyncpa [#allocation4], 1

</llo_original>
